<compile_context>
chip_gen: v7x
topology: tpu7x:2x2x1
jax: 0.10.0
libtpu: 0.0.40
codegen_flags: <defaults>
</compile_context>

<pallas_src>
import jax
import jax.numpy as jnp
from jax.experimental import pallas as pl
from jax.experimental.pallas import tpu as pltpu


def _copy_kernel(x_ref, o_ref):
    # Straight vld/vst identity copy of a lane-dense (block_rows, block_cols) tile.
    o_ref[...] = x_ref[...]


def _device_kind():
    try:
        return jax.devices()[0].device_kind.lower()
    except Exception:
        return ""


def _default_target_bytes(kind):
    # Per-block byte budget. 4 buffers are live (double-buffered in + out):
    #   v5e: 16 MiB scoped default  -> 4 x 3 MiB = 12 MiB   (fits)
    #   v6e: 32 MiB scoped default  -> 4 x 6 MiB = 24 MiB   (fits, bigger tiles
    #        amortize the ~0.35 us per-grid-step overhead on the 1.4 TB/s HBM)
    #   v7x: 32 MiB scoped / 64 MiB -> 4 x 3 MiB = 12 MiB   (plenty of headroom)
    if "v6" in kind:
        return 6 << 20
    return 3 << 20


def _sublane_multiple(dtype):
    # Sub-32-bit dtypes pack along sublanes: bf16 vreg is [16,128], int8 [32,128].
    isz = jnp.dtype(dtype).itemsize
    if isz >= 4:
        return 8
    if isz == 2:
        return 16
    return 32


def _pick_2d_layout(N, F):
    """Pick a lane-dense (rows, cols) view of the (N, F) buffer (row-major, so
    any such re-view is metadata only)."""
    total = N * F
    if F % 128 == 0:
        return N, F
    if total % 128 == 0:
        for L in (8192, 4096, 2048, 1024, 512, 256, 128):
            if total % L == 0:
                return total // L, L
    # Fallback: lane dim equals the full array dim (allowed by the (8,128)
    # rule), at the cost of masked tail stores.
    return N, F


def unflatten(x, C, H, W, *, use_kernel=True, block_rows=None, block_cols=None):
    """x: (N, C*H*W) -> (N, C, H, W)."""
    N, F = x.shape
    assert F == C * H * W, f"expected last dim {C * H * W}, got {F}"

    if not use_kernel:
        # Standalone Unflatten: metadata-only view, zero HBM traffic.
        return jnp.reshape(x, (N, C, H, W))

    kind = _device_kind()
    itemsize = jnp.dtype(x.dtype).itemsize
    sub = _sublane_multiple(x.dtype)
    target_bytes = _default_target_bytes(kind)

    # Lane-dense 2D view of the same buffer (metadata only).
    R, Wd = _pick_2d_layout(N, F)
    x2 = x.reshape(R, Wd)

    # --- Lane-dim blocking (only needed when one minimal-row block would
    #     overflow the per-block budget, i.e. very large F). ---
    if block_cols is None:
        if Wd % 128 == 0 and Wd * itemsize * sub > target_bytes:
            block_cols = max(128, ((target_bytes // (sub * itemsize)) // 128) * 128)
        else:
            block_cols = Wd
    block_cols = min(block_cols, Wd)

    # --- Row-dim blocking (dtype-aware sublane rounding). ---
    if block_rows is None:
        per_row_bytes = max(1, block_cols * itemsize)
        br = target_bytes // per_row_bytes
        block_rows = max(sub, (br // sub) * sub)
    block_rows = min(block_rows, R)
    if block_rows != R and block_rows % sub != 0:
        block_rows = max(sub, (block_rows // sub) * sub)
        if block_rows > R:
            block_rows = R

    # --- v7x has 2 TensorCores: make sure the grid has >= 2 blocks when the
    #     row dim allows it, so both cores stream HBM. ---
    if "v7" in kind:
        if pl.cdiv(R, block_rows) * pl.cdiv(Wd, block_cols) < 2 and R > sub:
            half = (((R + 1) // 2 + sub - 1) // sub) * sub
            if half < R:
                block_rows = half

    grid = (pl.cdiv(R, block_rows), pl.cdiv(Wd, block_cols))

    out2d = pl.pallas_call(
        _copy_kernel,
        out_shape=jax.ShapeDtypeStruct((R, Wd), x.dtype),
        grid_spec=pl.GridSpec(
            grid=grid,
            in_specs=[pl.BlockSpec((block_rows, block_cols), lambda i, j: (i, j))],
            out_specs=pl.BlockSpec((block_rows, block_cols), lambda i, j: (i, j)),
        ),
        # Each block writes exactly the region it read -> safe to alias.
        input_output_aliases={0: 0},
        compiler_params=pltpu.CompilerParams(
            dimension_semantics=("parallel", "parallel"),
        ),
        cost_estimate=pl.CostEstimate(
            flops=0,
            transcendentals=0,
            bytes_accessed=2 * N * F * itemsize,
        ),
    )(x2)

    # Metadata-only view to the 4D NCHW shape (same as torch .view).
    return out2d.reshape(N, C, H, W)


if __name__ == "__main__":
    key = jax.random.PRNGKey(0)

    # Shapes consistent with the module defaults (C=128, H=7, W=7), small N.
    N, C, H, W = 2, 128, 7, 7
    x = jax.random.normal(key, (N, C * H * W), dtype=jnp.float32)

    out = unflatten(x, C, H, W, use_kernel=True)
    out = jax.block_until_ready(out)

    ref = x.reshape(N, C, H, W)
    assert out.shape == (N, C, H, W)
    assert out.dtype == x.dtype
    assert jnp.array_equal(out, ref)

    # Secondary check: F not a multiple of 128 + packed dtype (exercises the
    # layout fallback and the dtype-aware sublane rounding).
    N2, C2, H2, W2 = 4, 8, 7, 7
    x2 = jax.random.normal(jax.random.PRNGKey(1), (N2, C2 * H2 * W2),
                           dtype=jnp.bfloat16)
    out2 = jax.block_until_ready(unflatten(x2, C2, H2, W2, use_kernel=True))
    assert jnp.array_equal(out2, x2.reshape(N2, C2, H2, W2))

    # Fast path (recommended default for standalone Unflatten).
    out3 = jax.block_until_ready(unflatten(x, C, H, W, use_kernel=False))
    assert jnp.array_equal(out3, ref)

    print("KERNEL_OK")
</pallas_src>

<mosaic_0001>
module attributes {stable_mosaic.version = 11 : i64} {
  func.func @_copy_kernel(%arg0: i32, %arg1: i32, %arg2: memref<2x6272xf32, #tpu.memory_space<vmem>>, %arg3: memref<2x6272xf32, #tpu.memory_space<vmem>>) attributes {dimension_semantics = [#tpu.dimension_semantics<parallel>, #tpu.dimension_semantics<parallel>], iteration_bounds = array<i64: 1, 1>, scalar_prefetch = 0 : i64, scratch_operands = 0 : i64, tpu.core_type = #tpu.core_type<tc>, window_params = [{transform_indices = @transform_0, window_bounds = array<i64: 2, 6272>}, {transform_indices = @transform_1, window_bounds = array<i64: 2, 6272>}]} {
    %c0 = arith.constant 0 : index
    %c0_0 = arith.constant 0 : index
    %0 = vector.load %arg2[%c0, %c0_0] : memref<2x6272xf32, #tpu.memory_space<vmem>>, vector<2x6272xf32>
    %c0_1 = arith.constant 0 : index
    %c0_2 = arith.constant 0 : index
    %1 = vector.load %arg3[%c0_1, %c0_2] : memref<2x6272xf32, #tpu.memory_space<vmem>>, vector<2x6272xf32>
    tpu.vector_store %arg3[%c0_1, %c0_2], %0 {strides = array<i32>} : memref<2x6272xf32, #tpu.memory_space<vmem>>, vector<2x6272xf32>,
    return
  }
  func.func @transform_0(%arg0: i32, %arg1: i32) -> (i32, i32) {
    %c0_i32 = arith.constant 0 : i32
    return %arg0, %arg1 : i32, i32
  }
  func.func @transform_1(%arg0: i32, %arg1: i32) -> (i32, i32) {
    %c0_i32 = arith.constant 0 : i32
    return %arg0, %arg1 : i32, i32
  }
}

</mosaic_0001>

<llo_original>
// kernel: tpu_custom_call.1
$region0: #{tpu_custom_call.1}
  #allocation0 [shape = 'u32[]', space=smem, size = 0x4, offset = 0x4, fixed_abs, tag = 'smem constant byte address 0x4 - core index']
  #allocation1 [shape = 'u32[144,128]{1,0:T(1,128)}', space=vmem, size = 0x12000, scoped, tag = 'internal scratch']
  %s0 = inlined_call_operand.hbm [shape: f32[2,6272], index: 0, kind: input, shape index: {}, may-alias: {0,1}]
  %s1 = inlined_call_operand.hbm [shape: f32[2,6272], index: 1, kind: output, shape index: {}, may-alias: {0,1}]
  %s2 = sld [smem:[#allocation0]]
  $region18: #{tpu_custom_call.1} parent=0
    _
  %s4 = ssub.s32 1, %s2
  %s5 = scalar_select 0, %s4, %s2
  $region1: #{tpu_custom_call.1} parent=0
    #allocation2 [shape = 'u8[50176]{0}', space=vmem, size = 0xc400, scoped, tag = 'input window, operand 0, single buffered']
    #allocation3 [shape = 's32[1]{0}', space=sflag, size = 0x4, scoped, tag = 'scoped memory for tpu_custom_call.1']
    #allocation4 [shape = 's32[1]{0}', space=sflag, size = 0x4, scoped, tag = 'scoped memory for tpu_custom_call.1']
    #allocation5 [shape = 'u8[50176]{0}', space=vmem, size = 0xc400, scoped, tag = 'output window, operand 0, single buffered']
    %6 = vsyncpa [#allocation3], 0
    %7 = vsyncpa [#allocation4], 0
    // Predicated region
    $region2: #{tpu_custom_call.1} parent=1 // pred_check
      _
    $region3: #{tpu_custom_call.1} parent=1 // pred_check_branch
      %9 = sbr.rel (0) target = $region5
    $region4: #{tpu_custom_call.1} parent=1 // pred_region
      %s11 = ssub.s32 1568, 1568
      %12 = vsyncadd [#allocation3], %s11
      %s14 = sshll.u32 [#allocation2], 4
      %s15 = int_to_ptr.vmem [resolvable:$true] %s14
      %17 = dma.hbm_to_vmem [thread:$0]  %s0, 1568, %s15, [#allocation3]
    $region5: #{tpu_custom_call.1} parent=1 // pred_fallthru
      _
    // Predicated region
    $region6: #{tpu_custom_call.1} parent=1 // pred_check
      _
    $region7: #{tpu_custom_call.1} parent=1 // pred_check_branch
      %19 = sbr.rel (0) target = $region9
    $region8: #{tpu_custom_call.1} parent=1 // pred_region
      %20 = dma.done [#allocation3], 1568
    $region9: #{tpu_custom_call.1} parent=1 // pred_fallthru
      _
    %v21 = vld [vmem:[#allocation2] sm:$0xff]
    %v22 = vld [vmem:[#allocation2 + $0x8] sm:$0xff]
    %v23 = vld [vmem:[#allocation2 + $0x10] sm:$0xff]
    %v24 = vld [vmem:[#allocation2 + $0x18] sm:$0xff]
    %v25 = vld [vmem:[#allocation2 + $0x20] sm:$0xff]
    %v26 = vld [vmem:[#allocation2 + $0x28] sm:$0xff]
    %v27 = vld [vmem:[#allocation2 + $0x30] sm:$0xff]
    %v28 = vld [vmem:[#allocation2 + $0x38] sm:$0xff]
    %v29 = vld [vmem:[#allocation2 + $0x40] sm:$0xff]
    %v30 = vld [vmem:[#allocation2 + $0x48] sm:$0xff]
    %v31 = vld [vmem:[#allocation2 + $0x50] sm:$0xff]
    %v32 = vld [vmem:[#allocation2 + $0x58] sm:$0xff]
    %v33 = vld [vmem:[#allocation2 + $0x60] sm:$0x3]
    %34 = vst [vmem:[#allocation5] sm:$0xff] %v21
    %35 = vst [vmem:[#allocation5 + $0x8] sm:$0xff] %v22
    %36 = vst [vmem:[#allocation5 + $0x10] sm:$0xff] %v23
    %37 = vst [vmem:[#allocation5 + $0x18] sm:$0xff] %v24
    %38 = vst [vmem:[#allocation5 + $0x20] sm:$0xff] %v25
    %39 = vst [vmem:[#allocation5 + $0x28] sm:$0xff] %v26
    %40 = vst [vmem:[#allocation5 + $0x30] sm:$0xff] %v27
    %41 = vst [vmem:[#allocation5 + $0x38] sm:$0xff] %v28
    %42 = vst [vmem:[#allocation5 + $0x40] sm:$0xff] %v29
    %43 = vst [vmem:[#allocation5 + $0x48] sm:$0xff] %v30
    %44 = vst [vmem:[#allocation5 + $0x50] sm:$0xff] %v31
    %45 = vst [vmem:[#allocation5 + $0x58] sm:$0xff] %v32
    %46 = vst [vmem:[#allocation5 + $0x60] sm:$0x3] %v33
    // Predicated region
    $region10: #{tpu_custom_call.1} parent=1 // pred_check
      _
    $region11: #{tpu_custom_call.1} parent=1 // pred_check_branch
      %48 = sbr.rel (0) target = $region13
    $region12: #{tpu_custom_call.1} parent=1 // pred_region
      %s50 = ssub.s32 1568, 1568
      %51 = vsyncadd [#allocation4], %s50
      %s53 = sshll.u32 [#allocation5], 4
      %s54 = int_to_ptr.vmem [resolvable:$true] %s53
      %56 = dma.vmem_to_hbm [thread:$0]  %s54, 1568, %s1, [#allocation4]
    $region13: #{tpu_custom_call.1} parent=1 // pred_fallthru
      _
    // Predicated region
    $region14: #{tpu_custom_call.1} parent=1 // pred_check
      _
    $region15: #{tpu_custom_call.1} parent=1 // pred_check_branch
      %58 = sbr.rel (0) target = $region17
    $region16: #{tpu_custom_call.1} parent=1 // pred_region
      %59 = dma.done [#allocation4], 1568
    $region17: #{tpu_custom_call.1} parent=1 // pred_fallthru
      _
    %60 = vsyncpa [#allocation3], 1
    %61 = vsyncpa [#allocation4], 1

</llo_original>
